<compile_context>
chip_gen: v6e
topology: v6e:2x2x1
jax: 0.10.0
libtpu: 0.0.40
codegen_flags: <defaults>
</compile_context>

<pallas_src>
import jax
import jax.numpy as jnp
from jax.experimental import pallas as pl
from jax.experimental.pallas import tpu as pltpu

HIDDEN = 24
LANE = 128          # vreg lane width: hidden dims are zero-padded to this


def _round_up(n, m):
    return ((n + m - 1) // m) * m


def mlp_kernel(x_ref, w1_ref, w2_ref, w3_ref, b_ref, o_ref):
    # One batch tile per grid step. Weights/biases are VMEM-resident across steps
    # (constant index_maps). Layer 1 uses VPU FMAs (K is tiny); layers 2/3 use the
    # MXU with f32 accumulation. ReLU on the VPU.
    x = x_ref[...]
    in_size = x.shape[1]
    w_out = o_ref.shape[-1]          # static: 128 (small B) or round_up(out,8)

    b1 = b_ref[0:1, :]
    b2 = b_ref[1:2, :]
    b3 = b_ref[2:3, :w_out]

    if in_size <= 16:
        # VPU broadcast-FMA: K=in_size is far too small to feed the MXU usefully.
        h1 = x[:, 0:1] * w1_ref[0:1, :] + b1
        for k in range(1, in_size):
            h1 = h1 + x[:, k:k + 1] * w1_ref[k:k + 1, :]
    else:
        h1 = jnp.dot(x, w1_ref[...], preferred_element_type=jnp.float32) + b1
    h1 = jnp.maximum(h1, 0.0)

    h2 = jnp.dot(h1, w2_ref[...], preferred_element_type=jnp.float32) + b2
    h2 = jnp.maximum(h2, 0.0)

    out = jnp.dot(h2, w3_ref[...], preferred_element_type=jnp.float32) + b3
    o_ref[...] = out.astype(o_ref.dtype)


def pad_params(p):
    """Zero-pad weights/biases to lane-dense (…, 128) layouts. Padded rows/cols are
    exactly zero so ReLU(0)=0 and zero-weight columns contribute nothing."""
    in_size = p["w1"].shape[0]
    out_size = p["w3"].shape[1]

    w1 = jnp.zeros((in_size, LANE), jnp.float32).at[:, :HIDDEN].set(p["w1"])
    w2 = jnp.zeros((LANE, LANE), jnp.float32).at[:HIDDEN, :HIDDEN].set(p["w2"])
    w3 = jnp.zeros((LANE, LANE), jnp.float32).at[:HIDDEN, :out_size].set(p["w3"])

    b = jnp.zeros((3, LANE), jnp.float32)
    b = b.at[0, :HIDDEN].set(p["b1"][0])
    b = b.at[1, :HIDDEN].set(p["b2"][0])
    b = b.at[2, :out_size].set(p["b3"][0])

    return {"w1": w1, "w2": w2, "w3": w3, "b": b,
            "in_size": in_size, "out_size": out_size}


def network_forward(x, padded, *, tb_max=2048, narrow_out_min_batch=1024):
    """x: (B, input_size) float32. padded: output of pad_params()."""
    w1, w2, w3, b = padded["w1"], padded["w2"], padded["w3"], padded["b"]
    out_size = padded["out_size"]
    B, in_size = x.shape
    b8 = _round_up(B, 8)

    # --- batch tile selection ---------------------------------------------
    # Small batches: single grid step (overhead dominates).
    # Larger batches: guarantee >= 2 grid steps so ("parallel",) can shard the
    # batch axis across v7x's 2 TensorCores, and cap the tile at tb_max rows
    # (VMEM footprint at tb=2048 is only a few MiB -- far under any limit).
    if b8 < 512:
        tb = b8
    else:
        n_steps = max(2, pl.cdiv(b8, tb_max))
        tb = _round_up(pl.cdiv(b8, n_steps), 8)
    grid = (pl.cdiv(b8, tb),)

    # --- output lane width --------------------------------------------------
    # Lane-dense (128, unmasked vst) for small B; narrow (round_up(out,8)) for
    # large B to cut output HBM writeback ~16x.
    if b8 >= narrow_out_min_batch:
        w_out = min(_round_up(out_size, 8), LANE)
    else:
        w_out = LANE
    w3_k = w3[:, :w_out]      # (LANE, w_out); columns beyond out_size are zero

    # Advisory cost estimate on real (unpadded) dims.
    flops = 2 * B * (in_size * HIDDEN + HIDDEN * HIDDEN + HIDDEN * out_size)
    bytes_accessed = 4 * (B * in_size + B * out_size
                          + in_size * HIDDEN + HIDDEN * HIDDEN
                          + HIDDEN * out_size + 2 * HIDDEN + out_size)

    out = pl.pallas_call(
        mlp_kernel,
        out_shape=jax.ShapeDtypeStruct((b8, w_out), jnp.float32),
        grid=grid,
        in_specs=[
            pl.BlockSpec((tb, in_size), lambda i: (i, 0)),    # x: streamed per tile
            pl.BlockSpec(w1.shape, lambda i: (0, 0)),         # weights: pinned in VMEM
            pl.BlockSpec(w2.shape, lambda i: (0, 0)),
            pl.BlockSpec((LANE, w_out), lambda i: (0, 0)),
            pl.BlockSpec(b.shape, lambda i: (0, 0)),          # all 3 biases, one DMA
        ],
        out_specs=pl.BlockSpec((tb, w_out), lambda i: (i, 0)),
        compiler_params=pltpu.CompilerParams(
            dimension_semantics=("parallel",),
        ),
        cost_estimate=pl.CostEstimate(
            flops=flops, transcendentals=0, bytes_accessed=bytes_accessed),
    )(x, w1, w2, w3_k, b)

    # Slice back to the logical shape (drops ragged batch rows and lane padding).
    return out[:B, :out_size]


def init_params(key, input_size, output_size, hidden=HIDDEN):
    # PyTorch nn.Linear-style init: U(-1/sqrt(fan_in), 1/sqrt(fan_in))
    ks = jax.random.split(key, 6)

    def lin(kw, kb, fan_in, fan_out):
        bound = 1.0 / jnp.sqrt(fan_in)
        w = jax.random.uniform(kw, (fan_in, fan_out), jnp.float32, -bound, bound)
        b = jax.random.uniform(kb, (1, fan_out), jnp.float32, -bound, bound)
        return w, b

    w1, b1 = lin(ks[0], ks[1], input_size, hidden)
    w2, b2 = lin(ks[2], ks[3], hidden, hidden)
    w3, b3 = lin(ks[4], ks[5], hidden, output_size)
    return {"w1": w1, "b1": b1, "w2": w2, "b2": b2, "w3": w3, "b3": b3}


def reference_forward(x, p):
    h1 = jnp.maximum(x @ p["w1"] + p["b1"], 0.0)
    h2 = jnp.maximum(h1 @ p["w2"] + p["b2"], 0.0)
    return h2 @ p["w3"] + p["b3"]


if __name__ == "__main__":
    key = jax.random.PRNGKey(0)
    k_x, k_x2, k_p = jax.random.split(key, 3)

    input_size, output_size, batch = 4, 2, 2   # CartPole-like DQN sizes
    params = init_params(k_p, input_size, output_size)
    padded = pad_params(params)

    # Small batch: single grid step, ragged (2-row) block, lane-dense output.
    x = jax.random.normal(k_x, (batch, input_size), jnp.float32)
    out = network_forward(x, padded)
    jax.block_until_ready(out)
    ref = reference_forward(x, params)
    assert out.shape == (batch, output_size)
    assert jnp.allclose(out, ref, atol=1e-4, rtol=1e-5)

    # Larger batch: 2-step parallel grid (megacore on v7x) + narrow output store.
    x_big = jax.random.normal(k_x2, (1024, input_size), jnp.float32)
    out_big = network_forward(x_big, padded)
    jax.block_until_ready(out_big)
    ref_big = reference_forward(x_big, params)
    assert out_big.shape == (1024, output_size)
    assert jnp.allclose(out_big, ref_big, atol=1e-4, rtol=1e-5)

    print("KERNEL_OK")
</pallas_src>

<mosaic_0001>
module attributes {stable_mosaic.version = 11 : i64} {
  func.func @mlp_kernel(%arg0: i32, %arg1: memref<8x4xf32, #tpu.memory_space<vmem>>, %arg2: memref<4x128xf32, #tpu.memory_space<vmem>>, %arg3: memref<128x128xf32, #tpu.memory_space<vmem>>, %arg4: memref<128x128xf32, #tpu.memory_space<vmem>>, %arg5: memref<3x128xf32, #tpu.memory_space<vmem>>, %arg6: memref<8x128xf32, #tpu.memory_space<vmem>>) attributes {dimension_semantics = [#tpu.dimension_semantics<parallel>], iteration_bounds = array<i64: 1>, scalar_prefetch = 0 : i64, scratch_operands = 0 : i64, tpu.core_type = #tpu.core_type<tc>, window_params = [{transform_indices = @transform_0, window_bounds = array<i64: 8, 4>}, {pipeline_mode = #tpu.pipeline_mode<synchronous>, transform_indices = @transform_1, window_bounds = array<i64: 4, 128>}, {pipeline_mode = #tpu.pipeline_mode<synchronous>, transform_indices = @transform_2, window_bounds = array<i64: 128, 128>}, {pipeline_mode = #tpu.pipeline_mode<synchronous>, transform_indices = @transform_3, window_bounds = array<i64: 128, 128>}, {pipeline_mode = #tpu.pipeline_mode<synchronous>, transform_indices = @transform_4, window_bounds = array<i64: 3, 128>}, {transform_indices = @transform_5, window_bounds = array<i64: 8, 128>}]} {
    %c0 = arith.constant 0 : index
    %c0_0 = arith.constant 0 : index
    %0 = vector.load %arg1[%c0, %c0_0] : memref<8x4xf32, #tpu.memory_space<vmem>>, vector<8x4xf32>
    %c0_1 = arith.constant 0 : index
    %c0_2 = arith.constant 0 : index
    %1 = vector.load %arg5[%c0_1, %c0_2] : memref<3x128xf32, #tpu.memory_space<vmem>>, vector<1x128xf32>
    %c1 = arith.constant 1 : index
    %c0_3 = arith.constant 0 : index
    %2 = vector.load %arg5[%c1, %c0_3] : memref<3x128xf32, #tpu.memory_space<vmem>>, vector<1x128xf32>
    %c2 = arith.constant 2 : index
    %c0_4 = arith.constant 0 : index
    %3 = vector.load %arg5[%c2, %c0_4] : memref<3x128xf32, #tpu.memory_space<vmem>>, vector<1x128xf32>
    %4 = vector.extract_strided_slice %0 {offsets = [0, 0], sizes = [8, 1], strides = [1, 1]} : vector<8x4xf32> to vector<8x1xf32>
    %c0_5 = arith.constant 0 : index
    %c0_6 = arith.constant 0 : index
    %5 = vector.load %arg2[%c0_5, %c0_6] : memref<4x128xf32, #tpu.memory_space<vmem>>, vector<1x128xf32>
    %6 = vector.broadcast %4 : vector<8x1xf32> to vector<8x128xf32>
    %7 = vector.broadcast %5 : vector<1x128xf32> to vector<8x128xf32>
    %8 = arith.mulf %6, %7 : vector<8x128xf32>
    %9 = vector.broadcast %1 : vector<1x128xf32> to vector<8x128xf32>
    %10 = arith.addf %8, %9 : vector<8x128xf32>
    %11 = vector.extract_strided_slice %0 {offsets = [0, 1], sizes = [8, 1], strides = [1, 1]} : vector<8x4xf32> to vector<8x1xf32>
    %c1_7 = arith.constant 1 : index
    %c0_8 = arith.constant 0 : index
    %12 = vector.load %arg2[%c1_7, %c0_8] : memref<4x128xf32, #tpu.memory_space<vmem>>, vector<1x128xf32>
    %13 = vector.broadcast %11 : vector<8x1xf32> to vector<8x128xf32>
    %14 = vector.broadcast %12 : vector<1x128xf32> to vector<8x128xf32>
    %15 = arith.mulf %13, %14 : vector<8x128xf32>
    %16 = arith.addf %10, %15 : vector<8x128xf32>
    %17 = vector.extract_strided_slice %0 {offsets = [0, 2], sizes = [8, 1], strides = [1, 1]} : vector<8x4xf32> to vector<8x1xf32>
    %c2_9 = arith.constant 2 : index
    %c0_10 = arith.constant 0 : index
    %18 = vector.load %arg2[%c2_9, %c0_10] : memref<4x128xf32, #tpu.memory_space<vmem>>, vector<1x128xf32>
    %19 = vector.broadcast %17 : vector<8x1xf32> to vector<8x128xf32>
    %20 = vector.broadcast %18 : vector<1x128xf32> to vector<8x128xf32>
    %21 = arith.mulf %19, %20 : vector<8x128xf32>
    %22 = arith.addf %16, %21 : vector<8x128xf32>
    %23 = vector.extract_strided_slice %0 {offsets = [0, 3], sizes = [8, 1], strides = [1, 1]} : vector<8x4xf32> to vector<8x1xf32>
    %c3 = arith.constant 3 : index
    %c0_11 = arith.constant 0 : index
    %24 = vector.load %arg2[%c3, %c0_11] : memref<4x128xf32, #tpu.memory_space<vmem>>, vector<1x128xf32>
    %25 = vector.broadcast %23 : vector<8x1xf32> to vector<8x128xf32>
    %26 = vector.broadcast %24 : vector<1x128xf32> to vector<8x128xf32>
    %27 = arith.mulf %25, %26 : vector<8x128xf32>
    %28 = arith.addf %22, %27 : vector<8x128xf32>
    %cst = arith.constant 0.000000e+00 : f32
    %29 = vector.broadcast %cst : f32 to vector<8x128xf32>
    %30 = arith.maximumf %28, %29 : vector<8x128xf32>
    %c0_12 = arith.constant 0 : index
    %c0_13 = arith.constant 0 : index
    %31 = vector.load %arg3[%c0_12, %c0_13] : memref<128x128xf32, #tpu.memory_space<vmem>>, vector<128x128xf32>
    %cst_14 = arith.constant dense<0.000000e+00> : vector<8x128xf32>
    %32 = tpu.matmul %30, %31, %cst_14 {dimension_numbers = #tpu.dot_dimension_numbers<[1], [0], [0], [1], [0, 0, 1, 1], [], []>} : vector<8x128xf32>, vector<128x128xf32>, vector<8x128xf32> -> vector<8x128xf32>
    %33 = vector.broadcast %2 : vector<1x128xf32> to vector<8x128xf32>
    %34 = arith.addf %32, %33 : vector<8x128xf32>
    %cst_15 = arith.constant 0.000000e+00 : f32
    %35 = vector.broadcast %cst_15 : f32 to vector<8x128xf32>
    %36 = arith.maximumf %34, %35 : vector<8x128xf32>
    %c0_16 = arith.constant 0 : index
    %c0_17 = arith.constant 0 : index
    %37 = vector.load %arg4[%c0_16, %c0_17] : memref<128x128xf32, #tpu.memory_space<vmem>>, vector<128x128xf32>
    %cst_18 = arith.constant dense<0.000000e+00> : vector<8x128xf32>
    %38 = tpu.matmul %36, %37, %cst_18 {dimension_numbers = #tpu.dot_dimension_numbers<[1], [0], [0], [1], [0, 0, 1, 1], [], []>} : vector<8x128xf32>, vector<128x128xf32>, vector<8x128xf32> -> vector<8x128xf32>
    %39 = vector.broadcast %3 : vector<1x128xf32> to vector<8x128xf32>
    %40 = arith.addf %38, %39 : vector<8x128xf32>
    %c0_19 = arith.constant 0 : index
    %c0_20 = arith.constant 0 : index
    %41 = vector.load %arg6[%c0_19, %c0_20] : memref<8x128xf32, #tpu.memory_space<vmem>>, vector<8x128xf32>
    tpu.vector_store %arg6[%c0_19, %c0_20], %40 {strides = array<i32>} : memref<8x128xf32, #tpu.memory_space<vmem>>, vector<8x128xf32>,
    return
  }
  func.func @transform_0(%arg0: i32) -> (i32, i32) {
    %c0_i32 = arith.constant 0 : i32
    %c0_i32_0 = arith.constant 0 : i32
    return %arg0, %c0_i32 : i32, i32
  }
  func.func @transform_1(%arg0: i32) -> (i32, i32) {
    %c0_i32 = arith.constant 0 : i32
    %c0_i32_0 = arith.constant 0 : i32
    %c0_i32_1 = arith.constant 0 : i32
    return %c0_i32, %c0_i32_0 : i32, i32
  }
  func.func @transform_2(%arg0: i32) -> (i32, i32) {
    %c0_i32 = arith.constant 0 : i32
    %c0_i32_0 = arith.constant 0 : i32
    %c0_i32_1 = arith.constant 0 : i32
    return %c0_i32, %c0_i32_0 : i32, i32
  }
  func.func @transform_3(%arg0: i32) -> (i32, i32) {
    %c0_i32 = arith.constant 0 : i32
    %c0_i32_0 = arith.constant 0 : i32
    %c0_i32_1 = arith.constant 0 : i32
    return %c0_i32, %c0_i32_0 : i32, i32
  }
  func.func @transform_4(%arg0: i32) -> (i32, i32) {
    %c0_i32 = arith.constant 0 : i32
    %c0_i32_0 = arith.constant 0 : i32
    %c0_i32_1 = arith.constant 0 : i32
    return %c0_i32, %c0_i32_0 : i32, i32
  }
  func.func @transform_5(%arg0: i32) -> (i32, i32) {
    %c0_i32 = arith.constant 0 : i32
    %c0_i32_0 = arith.constant 0 : i32
    return %arg0, %c0_i32 : i32, i32
  }
}

</mosaic_0001>

<llo_original>
// kernel: tpu_custom_call.1
$region0: #{tpu_custom_call.1}
  #allocation0 [shape = 'u32[]', space=smem, size = 0x4, offset = 0x4, fixed_abs, tag = 'smem constant byte address 0x4 - core index']
  #allocation1 [shape = 'u32[144,128]{1,0:T(1,128)}', space=vmem, size = 0x12000, scoped, tag = 'internal scratch']
  %s0 = inlined_call_operand.hbm [shape: f32[2,4], index: 0, kind: input, shape index: {}]
  %s1 = inlined_call_operand.hbm [shape: f32[4,128], index: 1, kind: input, shape index: {}]
  %s2 = inlined_call_operand.hbm [shape: f32[128,128], index: 2, kind: input, shape index: {}]
  %s3 = inlined_call_operand.hbm [shape: f32[128,128], index: 3, kind: input, shape index: {}]
  %s4 = inlined_call_operand.vmem [shape: f32[3,128], index: 4, kind: input, shape index: {}]
  %s5 = inlined_call_operand.hbm [shape: f32[8,128], index: 5, kind: output, shape index: {}]
  %s6 = sld [smem:[#allocation0]]
  $region46: #{tpu_custom_call.1} parent=0
    _
  %s8 = ssub.s32 1, %s6
  %s9 = scalar_select 0, %s8, %s6
  $region1: #{tpu_custom_call.1} parent=0
    #allocation2 [shape = 'u8[4096]{0}', space=vmem, size = 0x1000, scoped, tag = 'input window, operand 0, single buffered']
    #allocation3 [shape = 's32[1]{0}', space=sflag, size = 0x4, scoped, tag = 'scoped memory for tpu_custom_call.1']
    #allocation4 [shape = 's32[1]{0}', space=sflag, size = 0x4, scoped, tag = 'scoped memory for tpu_custom_call.1']
    #allocation5 [shape = 'u8[2048]{0}', space=vmem, size = 0x800, scoped, tag = 'input window, operand 1, single buffered']
    #allocation6 [shape = 's32[1]{0}', space=sflag, size = 0x4, scoped, tag = 'scoped memory for tpu_custom_call.1']
    #allocation7 [shape = 'u8[65536]{0}', space=vmem, size = 0x10000, scoped, tag = 'input window, operand 2, single buffered']
    #allocation8 [shape = 'u8[65536]{0}', space=vmem, size = 0x10000, scoped, tag = 'input window, operand 3, single buffered']
    #allocation9 [shape = 's32[1]{0}', space=sflag, size = 0x4, scoped, tag = 'scoped memory for tpu_custom_call.1']
    #allocation10 [shape = 'u8[4096]{0}', space=vmem, size = 0x1000, scoped, tag = 'output window, operand 0, single buffered']
    %10 = vsyncpa [#allocation3], 0
    %11 = vsyncpa [#allocation6], 0
    %12 = vsyncpa [#allocation9], 0
    %13 = vsyncpa [#allocation4], 0
    // Predicated region
    $region2: #{tpu_custom_call.1} parent=1 // pred_check
      _
    $region3: #{tpu_custom_call.1} parent=1 // pred_check_branch
      %15 = sbr.rel (0) target = $region5
    $region4: #{tpu_custom_call.1} parent=1 // pred_region
      %s17 = ssub.s32 128, 32
      %18 = vsyncadd [#allocation3], %s17
      %s19 = sshll.u32 [#allocation2], 4
      %s20 = int_to_ptr.vmem [resolvable:$true] %s19
      %25 = dma.hbm_to_vmem [thread:$0]  %s0, 32, %s20, [#allocation3], 32, 32, 2
    $region5: #{tpu_custom_call.1} parent=1 // pred_fallthru
      _
    // Predicated region
    $region6: #{tpu_custom_call.1} parent=1 // pred_check
      _
    $region7: #{tpu_custom_call.1} parent=1 // pred_check_branch
      %27 = sbr.rel (0) target = $region9
    $region8: #{tpu_custom_call.1} parent=1 // pred_region
      %s29 = ssub.s32 64, 64
      %30 = vsyncadd [#allocation6], %s29
      %s32 = sshll.u32 [#allocation5], 4
      %s33 = int_to_ptr.vmem [resolvable:$true] %s32
      %35 = dma.hbm_to_vmem [thread:$0]  %s1, 64, %s33, [#allocation6]
    $region9: #{tpu_custom_call.1} parent=1 // pred_fallthru
      _
    // Predicated region
    $region10: #{tpu_custom_call.1} parent=1 // pred_check
      _
    $region11: #{tpu_custom_call.1} parent=1 // pred_check_branch
      %37 = sbr.rel (0) target = $region13
    $region12: #{tpu_custom_call.1} parent=1 // pred_region
      %s39 = ssub.s32 2048, 2048
      %40 = vsyncadd [#allocation6], %s39
      %s41 = sshll.u32 [#allocation7], 4
      %s42 = int_to_ptr.vmem [resolvable:$true] %s41
      %47 = dma.hbm_to_vmem [thread:$0]  %s2, 2048, %s42, [#allocation6], 128, 128, 8
    $region13: #{tpu_custom_call.1} parent=1 // pred_fallthru
      _
    // Predicated region
    $region14: #{tpu_custom_call.1} parent=1 // pred_check
      _
    $region15: #{tpu_custom_call.1} parent=1 // pred_check_branch
      %49 = sbr.rel (0) target = $region17
    $region16: #{tpu_custom_call.1} parent=1 // pred_region
      %s51 = ssub.s32 2048, 2048
      %52 = vsyncadd [#allocation9], %s51
      %s53 = sshll.u32 [#allocation8], 4
      %s54 = int_to_ptr.vmem [resolvable:$true] %s53
      %59 = dma.hbm_to_vmem [thread:$0]  %s3, 2048, %s54, [#allocation9], 128, 128, 8
    $region17: #{tpu_custom_call.1} parent=1 // pred_fallthru
      _
    // Predicated region
    $region18: #{tpu_custom_call.1} parent=1 // pred_check
      _
    $region19: #{tpu_custom_call.1} parent=1 // pred_check_branch
      %61 = sbr.rel (0) target = $region21
    $region20: #{tpu_custom_call.1} parent=1 // pred_region
      _
    $region21: #{tpu_custom_call.1} parent=1 // pred_fallthru
      _
    // Predicated region
    $region22: #{tpu_custom_call.1} parent=1 // pred_check
      _
    $region23: #{tpu_custom_call.1} parent=1 // pred_check_branch
      %63 = sbr.rel (0) target = $region25
    $region24: #{tpu_custom_call.1} parent=1 // pred_region
      %64 = dma.done [#allocation3], 128
    $region25: #{tpu_custom_call.1} parent=1 // pred_fallthru
      _
    // Predicated region
    $region26: #{tpu_custom_call.1} parent=1 // pred_check
      _
    $region27: #{tpu_custom_call.1} parent=1 // pred_check_branch
      %66 = sbr.rel (0) target = $region29
    $region28: #{tpu_custom_call.1} parent=1 // pred_region
      %67 = dma.done [#allocation6], 64
    $region29: #{tpu_custom_call.1} parent=1 // pred_fallthru
      _
    // Predicated region
    $region30: #{tpu_custom_call.1} parent=1 // pred_check
      _
    $region31: #{tpu_custom_call.1} parent=1 // pred_check_branch
      %69 = sbr.rel (0) target = $region33
    $region32: #{tpu_custom_call.1} parent=1 // pred_region
      %70 = dma.done [#allocation6], 2048
    $region33: #{tpu_custom_call.1} parent=1 // pred_fallthru
      _
    // Predicated region
    $region34: #{tpu_custom_call.1} parent=1 // pred_check
      _
    $region35: #{tpu_custom_call.1} parent=1 // pred_check_branch
      %72 = sbr.rel (0) target = $region37
    $region36: #{tpu_custom_call.1} parent=1 // pred_region
      %73 = dma.done [#allocation9], 2048
    $region37: #{tpu_custom_call.1} parent=1 // pred_fallthru
      _
    %v74 = vld [vmem:[#allocation2] sm:$0xff]
    %v75 = vld [vmem:[%s4] sm:$0x1]
    %v76 = vld [vmem:[%s4 + $0x1] sm:$0x1]
    %v77 = vld [vmem:[%s4 + $0x2] sm:$0x1]
    %v78 = vld [vmem:[#allocation5] sm:$0x1]
    %80 = vset.pattern.permute.xlu0 0
    %81 = vperm.xlu0 %80, %v74
    %v82 = vpop.permute.xlu0 %81
    %v84 = vlaneseq
    %v85 = vshrl.u32 %v84, 7
    %v86 = vsub.s32 0, %v85
    %v87 = vrot.slane %v78, %v86
    %v88 = vmul.f32 %v82, %v87
    %v89 = vlaneseq
    %v90 = vshrl.u32 %v89, 7
    %v91 = vsub.s32 0, %v90
    %v92 = vrot.slane %v75, %v91
    %v93 = vadd.f32 %v88, %v92
    %v94 = vld [vmem:[#allocation5 + $0x1] sm:$0x1]
    %95 = vset.pattern.permute.xlu0 1
    %96 = vperm.xlu0 %95, %v74
    %v97 = vpop.permute.xlu0 %96
    %v99 = vlaneseq
    %v100 = vshrl.u32 %v99, 7
    %v101 = vsub.s32 0, %v100
    %v102 = vrot.slane %v94, %v101
    %v103 = vmul.f32 %v97, %v102
    %v104 = vadd.f32 %v93, %v103
    %v105 = vld [vmem:[#allocation5 + $0x2] sm:$0x1]
    %106 = vset.pattern.permute.xlu0 2
    %107 = vperm.xlu0 %106, %v74
    %v108 = vpop.permute.xlu0 %107
    %v110 = vlaneseq
    %v111 = vshrl.u32 %v110, 7
    %v112 = vsub.s32 0, %v111
    %v113 = vrot.slane %v105, %v112
    %v114 = vmul.f32 %v108, %v113
    %v115 = vadd.f32 %v104, %v114
    %v116 = vld [vmem:[#allocation5 + $0x3] sm:$0x1]
    %117 = vset.pattern.permute.xlu0 3
    %118 = vperm.xlu0 %117, %v74
    %v119 = vpop.permute.xlu0 %118
    %v121 = vlaneseq
    %v122 = vshrl.u32 %v121, 7
    %v123 = vsub.s32 0, %v122
    %v124 = vrot.slane %v116, %v123
    %v125 = vmul.f32 %v119, %v124
    %v126 = vadd.f32 %v115, %v125
    %v127 = vmax.f32 %v126, 0.0
    %v128 = vld [vmem:[#allocation7] sm:$0xff]
    %v129 = vld [vmem:[#allocation7 + $0x8] sm:$0xff]
    %v130 = vld [vmem:[#allocation7 + $0x10] sm:$0xff]
    %v131 = vld [vmem:[#allocation7 + $0x18] sm:$0xff]
    %v132 = vld [vmem:[#allocation7 + $0x20] sm:$0xff]
    %v133 = vld [vmem:[#allocation7 + $0x28] sm:$0xff]
    %v134 = vld [vmem:[#allocation7 + $0x30] sm:$0xff]
    %v135 = vld [vmem:[#allocation7 + $0x38] sm:$0xff]
    %v136 = vld [vmem:[#allocation7 + $0x40] sm:$0xff]
    %v137 = vld [vmem:[#allocation7 + $0x48] sm:$0xff]
    %v138 = vld [vmem:[#allocation7 + $0x50] sm:$0xff]
    %v139 = vld [vmem:[#allocation7 + $0x58] sm:$0xff]
    %v140 = vld [vmem:[#allocation7 + $0x60] sm:$0xff]
    %v141 = vld [vmem:[#allocation7 + $0x68] sm:$0xff]
    %v142 = vld [vmem:[#allocation7 + $0x70] sm:$0xff]
    %v143 = vld [vmem:[#allocation7 + $0x78] sm:$0xff]
    %v144 = vlaneseq
    %v145 = vshrl.u32 %v144, 7
    %v146 = vsub.s32 0, %v145
    %v147 = vrot.slane %v76, %v146
    %148 = vmatprep.subr.mxu0 0.0
    %149 = vmatpush1.msra.mxu0 %v143
    %150 = vmatprep.subr.mxu0 0.0
    %151 = vmatpush1.msra.mxu0 %v142
    %152 = vmatprep.subr.mxu0 0.0
    %153 = vmatpush1.msra.mxu0 %v141
    %154 = vmatprep.subr.mxu0 0.0
    %155 = vmatpush1.msra.mxu0 %v140
    %156 = vmatprep.subr.mxu0 0.0
    %157 = vmatpush1.msra.mxu0 %v139
    %158 = vmatprep.subr.mxu0 0.0
    %159 = vmatpush1.msra.mxu0 %v138
    %160 = vmatprep.subr.mxu0 0.0
    %161 = vmatpush1.msra.mxu0 %v137
    %162 = vmatprep.subr.mxu0 0.0
    %163 = vmatpush1.msra.mxu0 %v136
    %164 = vmatprep.subr.mxu0 0.0
    %165 = vmatpush1.msra.mxu0 %v135
    %166 = vmatprep.subr.mxu0 0.0
    %167 = vmatpush1.msra.mxu0 %v134
    %168 = vmatprep.subr.mxu0 0.0
    %169 = vmatpush1.msra.mxu0 %v133
    %170 = vmatprep.subr.mxu0 0.0
    %171 = vmatpush1.msra.mxu0 %v132
    %172 = vmatprep.subr.mxu0 0.0
    %173 = vmatpush1.msra.mxu0 %v131
    %174 = vmatprep.subr.mxu0 0.0
    %175 = vmatpush1.msra.mxu0 %v130
    %176 = vmatprep.subr.mxu0 0.0
    %177 = vmatpush1.msra.mxu0 %v129
    %178 = vmatprep.subr.mxu0 0.0
    %179 = vmatpush1.msra.mxu0 %v128
    %180 = vmatprep.subr.mxu0 0.0
    %181 = vmatpush2.msra.mxu0 0.0
    %182 = vmatprep.subr.mxu0 0.0
    %183 = vmatpush2.msra.mxu0 0.0
    %184 = vmatprep.subr.mxu0 0.0
    %185 = vmatpush2.msra.mxu0 0.0
    %186 = vmatprep.subr.mxu0 0.0
    %187 = vmatpush2.msra.mxu0 0.0
    %188 = vmatprep.subr.mxu0 0.0
    %189 = vmatpush2.msra.mxu0 0.0
    %190 = vmatprep.subr.mxu0 0.0
    %191 = vmatpush2.msra.mxu0 0.0
    %192 = vmatprep.subr.mxu0 0.0
    %193 = vmatpush2.msra.mxu0 0.0
    %194 = vmatprep.subr.mxu0 0.0
    %195 = vmatpush2.msra.mxu0 0.0
    %196 = vmatprep.subr.mxu0 0.0
    %197 = vmatpush2.msra.mxu0 0.0
    %198 = vmatprep.subr.mxu0 0.0
    %199 = vmatpush2.msra.mxu0 0.0
    %200 = vmatprep.subr.mxu0 0.0
    %201 = vmatpush2.msra.mxu0 0.0
    %202 = vmatprep.subr.mxu0 0.0
    %203 = vmatpush2.msra.mxu0 0.0
    %204 = vmatprep.subr.mxu0 0.0
    %205 = vmatpush2.msra.mxu0 0.0
    %206 = vmatprep.subr.mxu0 0.0
    %207 = vmatpush2.msra.mxu0 0.0
    %208 = vmatprep.subr.mxu0 0.0
    %209 = vmatpush2.msra.mxu0 0.0
    %210 = vmatprep.subr.mxu0 0.0
    %211 = vmatpush2.msra.mxu0 0.0
    %212 = vmatprep.mubr.f32.mxu0 0.0
    %213 = vmatmul.mubr.f32.gmra.mxu0 %v127
    %v214 = vpop.f32.mrf.mxu0
    %v215 = vadd.f32 %v147, %v214
    %v216 = vpop.f32.mrf.mxu0
    %217 = vdwg.mxu0
    %v218 = vmax.f32 %v215, 0.0
    %v219 = vld [vmem:[#allocation8] sm:$0xff]
    %v220 = vld [vmem:[#allocation8 + $0x8] sm:$0xff]
    %v221 = vld [vmem:[#allocation8 + $0x10] sm:$0xff]
    %v222 = vld [vmem:[#allocation8 + $0x18] sm:$0xff]
    %v223 = vld [vmem:[#allocation8 + $0x20] sm:$0xff]
    %v224 = vld [vmem:[#allocation8 + $0x28] sm:$0xff]
    %v225 = vld [vmem:[#allocation8 + $0x30] sm:$0xff]
    %v226 = vld [vmem:[#allocation8 + $0x38] sm:$0xff]
    %v227 = vld [vmem:[#allocation8 + $0x40] sm:$0xff]
    %v228 = vld [vmem:[#allocation8 + $0x48] sm:$0xff]
    %v229 = vld [vmem:[#allocation8 + $0x50] sm:$0xff]
    %v230 = vld [vmem:[#allocation8 + $0x58] sm:$0xff]
    %v231 = vld [vmem:[#allocation8 + $0x60] sm:$0xff]
    %v232 = vld [vmem:[#allocation8 + $0x68] sm:$0xff]
    %v233 = vld [vmem:[#allocation8 + $0x70] sm:$0xff]
    %v234 = vld [vmem:[#allocation8 + $0x78] sm:$0xff]
    %v235 = vlaneseq
    %v236 = vshrl.u32 %v235, 7
    %v237 = vsub.s32 0, %v236
    %v238 = vrot.slane %v77, %v237
    %239 = vmatprep.subr.mxu0 0.0
    %240 = vmatpush1.msra.mxu0 %v234
    %241 = vmatprep.subr.mxu0 0.0
    %242 = vmatpush1.msra.mxu0 %v233
    %243 = vmatprep.subr.mxu0 0.0
    %244 = vmatpush1.msra.mxu0 %v232
    %245 = vmatprep.subr.mxu0 0.0
    %246 = vmatpush1.msra.mxu0 %v231
    %247 = vmatprep.subr.mxu0 0.0
    %248 = vmatpush1.msra.mxu0 %v230
    %249 = vmatprep.subr.mxu0 0.0
    %250 = vmatpush1.msra.mxu0 %v229
    %251 = vmatprep.subr.mxu0 0.0
    %252 = vmatpush1.msra.mxu0 %v228
    %253 = vmatprep.subr.mxu0 0.0
    %254 = vmatpush1.msra.mxu0 %v227
    %255 = vmatprep.subr.mxu0 0.0
    %256 = vmatpush1.msra.mxu0 %v226
    %257 = vmatprep.subr.mxu0 0.0
    %258 = vmatpush1.msra.mxu0 %v225
    %259 = vmatprep.subr.mxu0 0.0
    %260 = vmatpush1.msra.mxu0 %v224
    %261 = vmatprep.subr.mxu0 0.0
    %262 = vmatpush1.msra.mxu0 %v223
    %263 = vmatprep.subr.mxu0 0.0
    %264 = vmatpush1.msra.mxu0 %v222
    %265 = vmatprep.subr.mxu0 0.0
    %266 = vmatpush1.msra.mxu0 %v221
    %267 = vmatprep.subr.mxu0 0.0
    %268 = vmatpush1.msra.mxu0 %v220
    %269 = vmatprep.subr.mxu0 0.0
    %270 = vmatpush1.msra.mxu0 %v219
    %271 = vmatprep.subr.mxu0 0.0
    %272 = vmatpush2.msra.mxu0 0.0
    %273 = vmatprep.subr.mxu0 0.0
    %274 = vmatpush2.msra.mxu0 0.0
    %275 = vmatprep.subr.mxu0 0.0
    %276 = vmatpush2.msra.mxu0 0.0
    %277 = vmatprep.subr.mxu0 0.0
    %278 = vmatpush2.msra.mxu0 0.0
    %279 = vmatprep.subr.mxu0 0.0
    %280 = vmatpush2.msra.mxu0 0.0
    %281 = vmatprep.subr.mxu0 0.0
    %282 = vmatpush2.msra.mxu0 0.0
    %283 = vmatprep.subr.mxu0 0.0
    %284 = vmatpush2.msra.mxu0 0.0
    %285 = vmatprep.subr.mxu0 0.0
    %286 = vmatpush2.msra.mxu0 0.0
    %287 = vmatprep.subr.mxu0 0.0
    %288 = vmatpush2.msra.mxu0 0.0
    %289 = vmatprep.subr.mxu0 0.0
    %290 = vmatpush2.msra.mxu0 0.0
    %291 = vmatprep.subr.mxu0 0.0
    %292 = vmatpush2.msra.mxu0 0.0
    %293 = vmatprep.subr.mxu0 0.0
    %294 = vmatpush2.msra.mxu0 0.0
    %295 = vmatprep.subr.mxu0 0.0
    %296 = vmatpush2.msra.mxu0 0.0
    %297 = vmatprep.subr.mxu0 0.0
    %298 = vmatpush2.msra.mxu0 0.0
    %299 = vmatprep.subr.mxu0 0.0
    %300 = vmatpush2.msra.mxu0 0.0
    %301 = vmatprep.subr.mxu0 0.0
    %302 = vmatpush2.msra.mxu0 0.0
    %303 = vmatprep.mubr.f32.mxu0 0.0
    %304 = vmatmul.mubr.f32.gmra.mxu0 %v218
    %v305 = vpop.f32.mrf.mxu0
    %v306 = vadd.f32 %v238, %v305
    %v307 = vpop.f32.mrf.mxu0
    %308 = vdwg.mxu0
    %309 = vst [vmem:[#allocation10] sm:$0xff] %v306
    // Predicated region
    $region38: #{tpu_custom_call.1} parent=1 // pred_check
      _
    $region39: #{tpu_custom_call.1} parent=1 // pred_check_branch
      %311 = sbr.rel (0) target = $region41
    $region40: #{tpu_custom_call.1} parent=1 // pred_region
      %s313 = ssub.s32 128, 128
      %314 = vsyncadd [#allocation4], %s313
      %s316 = sshll.u32 [#allocation10], 4
      %s317 = int_to_ptr.vmem [resolvable:$true] %s316
      %319 = dma.vmem_to_hbm [thread:$0]  %s317, 128, %s5, [#allocation4]
    $region41: #{tpu_custom_call.1} parent=1 // pred_fallthru
      _
    // Predicated region
    $region42: #{tpu_custom_call.1} parent=1 // pred_check
      _
    $region43: #{tpu_custom_call.1} parent=1 // pred_check_branch
      %321 = sbr.rel (0) target = $region45
    $region44: #{tpu_custom_call.1} parent=1 // pred_region
      %322 = dma.done [#allocation4], 128
    $region45: #{tpu_custom_call.1} parent=1 // pred_fallthru
      _
    %323 = vsyncpa [#allocation3], 1
    %324 = vsyncpa [#allocation6], 1
    %325 = vsyncpa [#allocation9], 1
    %326 = vsyncpa [#allocation4], 1

</llo_original>
